<compile_context>
chip_gen: v7x
topology: tpu7x:2x2x1
jax: 0.10.0
libtpu: 0.0.40
codegen_flags: <defaults>
</compile_context>

<pallas_src>
import jax
import jax.numpy as jnp
from jax.experimental import pallas as pl
from jax.experimental.pallas import tpu as pltpu


def get_expansion_index(size, kernel_size):
    """Port of SE2SpatialUnpool.get_expansion_index (flattened, K=1)."""
    nx, ny, ntheta = size
    Fout = nx * kernel_size * ny * kernel_size
    Vout = Fout * ntheta
    indices = jnp.arange(Vout)
    ix = (indices % Fout) % (nx * kernel_size) // kernel_size
    iy = (indices % Fout) // (nx * kernel_size * kernel_size)
    itheta = indices // Fout
    return ix + nx * iy + nx * ny * itheta           # values in [0, nx*ny*ntheta)


def _replication_matrix(nx, ks):
    """(nx, ks*ks*nx) 0/1 matrix: out_row = x_row @ G replicates every x value
    ks times along lanes and repeats the whole pattern ks times (the folded
    y-replication).  Tiny: nx * ks^2 * nx elements (e.g. 64x256 f32 = 64 KiB)."""
    nxk = nx * ks
    cols = jnp.arange(ks * nxk)
    src = (cols % nxk) // ks                         # source x index per column
    return (src[None, :] == jnp.arange(nx)[:, None]).astype(jnp.float32)


def _unpool_mm_kernel(x_ref, g_ref, o_ref):
    # (tr, nx) @ (nx, ks*ks*nx) -> (tr, ks*ks*nx).  G is 0/1 so this is an
    # exact gather for floating-point inputs; MACs/out-element = nx, far below
    # the HBM roofline budget on v5e/v6e/v7x -> kernel stays memory-bound.
    o_ref[...] = jnp.dot(
        x_ref[...], g_ref[...], preferred_element_type=jnp.float32
    ).astype(o_ref.dtype)


def _row_tiling(R, max_tile=512):
    """Pick (R_pad, tr): tr divides R_pad, is a multiple of 8 (or == R_pad),
    prefers >= 2 grid steps (keeps both v7x TensorCores busy) and avoids
    padding whenever a suitable divisor of R exists."""
    divs = [t for t in range(8, min(R, max_tile) + 1, 8) if R % t == 0]
    if divs:
        pref = [t for t in divs if R // t >= 2] or divs
        return R, max(pref)
    if R < 8:
        return R, R                                  # single full-size block
    R_pad = ((R + 7) // 8) * 8                       # rare ragged fallback
    divs = [t for t in range(8, min(R_pad, max_tile) + 1, 8) if R_pad % t == 0]
    return R_pad, max(divs)


def _unpool_rows(x2, g):
    """x2: (R, nx) float, g: (nx, Cout) 0/1 in x2.dtype -> (R, Cout)."""
    R, nx = x2.shape
    Cout = g.shape[1]
    R_pad, tr = _row_tiling(R)
    if R_pad != R:
        x2 = jnp.pad(x2, ((0, R_pad - R), (0, 0)))
    itemsize = jnp.dtype(x2.dtype).itemsize
    out = pl.pallas_call(
        _unpool_mm_kernel,
        out_shape=jax.ShapeDtypeStruct((R_pad, Cout), x2.dtype),
        grid_spec=pltpu.PrefetchScalarGridSpec(
            num_scalar_prefetch=0,
            grid=(R_pad // tr,),
            in_specs=[
                pl.BlockSpec((tr, nx), lambda i: (i, 0)),
                # constant block index -> fetched once, stays resident; tiny.
                pl.BlockSpec((nx, Cout), lambda i: (0, 0)),
            ],
            out_specs=pl.BlockSpec((tr, Cout), lambda i: (i, 0)),
        ),
        compiler_params=pltpu.CompilerParams(dimension_semantics=("parallel",)),
        cost_estimate=pl.CostEstimate(
            flops=2 * R_pad * nx * Cout,
            transcendentals=0,
            bytes_accessed=(R_pad * nx + nx * Cout + R_pad * Cout) * itemsize,
        ),
    )(x2, g)
    return out if R_pad == R else out[:R]


class SE2SpatialUnpool:
    """JAX/Pallas port of the SE(2) spatial unpooling layer."""

    def __init__(self, kernel_size, size, expansion):
        if expansion not in {"max", "avg", "rand"}:
            raise ValueError(
                f"{expansion} is not a valid value for expansion, must be 'max' 'avg' or 'rand'."
            )
        self.kernel_size = kernel_size
        self.size = size
        self.shortcut = kernel_size == 1
        nx, ny, ntheta = size
        self.nx, self.ny, self.ntheta = nx, ny, ntheta
        if not self.shortcut:
            ks = kernel_size
            self.Vout = nx * ks * ny * ks * ntheta
            # Factorized gather matrix (nx, ks*ks*nx); avg/max/rand coincide
            # because the torch expansion index has K=1.
            self._g_f32 = _replication_matrix(nx, ks)
            # Flat expansion index kept only for the non-float fallback.
            self._index = get_expansion_index(size, ks)

    def __call__(self, x):
        if self.shortcut:
            return x
        if not jnp.issubdtype(x.dtype, jnp.floating):
            # One-hot MXU matmul is only exact for floats (and v7x has no int
            # MXU); integer inputs fall back to a plain XLA gather.
            return x[..., self._index]
        lead = x.shape[:-1]
        x2 = x.reshape(-1, self.nx)                  # rows = (batch..., theta, y)
        out2 = _unpool_rows(x2, self._g_f32.astype(x.dtype))  # cast is tiny
        return out2.reshape(lead + (self.Vout,))


if __name__ == "__main__":
    key = jax.random.PRNGKey(0)
    B, C = 2, 4
    nx, ny, ntheta, ks = 8, 8, 4, 2
    V = nx * ny * ntheta          # 256
    Vout = V * ks * ks            # 1024

    x = jax.random.normal(key, (B, C, V), dtype=jnp.float32)

    unpool = SE2SpatialUnpool(kernel_size=ks, size=(nx, ny, ntheta), expansion="avg")
    out = jax.block_until_ready(unpool(x))

    # Pure-JAX reference mirroring torch: x[..., index].mean(-1) with K=1.
    idx = get_expansion_index((nx, ny, ntheta), ks)
    ref = x[..., idx]
    assert out.shape == (B, C, Vout), out.shape
    assert jnp.allclose(out, ref, atol=1e-6), "f32 mismatch vs reference gather"

    # bf16 path: the 0/1 matmul is still an (essentially exact) gather.
    x_bf = x.astype(jnp.bfloat16)
    out_bf = jax.block_until_ready(
        SE2SpatialUnpool(ks, (nx, ny, ntheta), "max")(x_bf)
    )
    assert jnp.allclose(
        out_bf.astype(jnp.float32), x_bf[..., idx].astype(jnp.float32), atol=1e-2
    ), "bf16 mismatch vs reference gather"

    # Integer fallback path (plain XLA gather).
    x_i = (x * 100).astype(jnp.int32)
    out_i = jax.block_until_ready(
        SE2SpatialUnpool(ks, (nx, ny, ntheta), "rand")(x_i)
    )
    assert jnp.array_equal(out_i, x_i[..., idx]), "int mismatch vs reference gather"

    # shortcut path (kernel_size == 1) returns input unchanged
    ident = SE2SpatialUnpool(kernel_size=1, size=(nx, ny, ntheta), expansion="max")
    assert ident(x) is x

    print("KERNEL_OK")
</pallas_src>

<mosaic_0001>
module attributes {stable_mosaic.version = 11 : i64} {
  func.func @_unpool_mm_kernel(%arg0: i32, %arg1: memref<128x8xf32, #tpu.memory_space<vmem>>, %arg2: memref<8x32xf32, #tpu.memory_space<vmem>>, %arg3: memref<128x32xf32, #tpu.memory_space<vmem>>) attributes {dimension_semantics = [#tpu.dimension_semantics<parallel>], iteration_bounds = array<i64: 2>, scalar_prefetch = 0 : i64, scratch_operands = 0 : i64, tpu.core_type = #tpu.core_type<tc>, window_params = [{transform_indices = @transform_0, window_bounds = array<i64: 128, 8>}, {pipeline_mode = #tpu.pipeline_mode<synchronous>, transform_indices = @transform_1, window_bounds = array<i64: 8, 32>}, {transform_indices = @transform_2, window_bounds = array<i64: 128, 32>}]} {
    %c0 = arith.constant 0 : index
    %c0_0 = arith.constant 0 : index
    %0 = vector.load %arg1[%c0, %c0_0] : memref<128x8xf32, #tpu.memory_space<vmem>>, vector<128x8xf32>
    %c0_1 = arith.constant 0 : index
    %c0_2 = arith.constant 0 : index
    %1 = vector.load %arg2[%c0_1, %c0_2] : memref<8x32xf32, #tpu.memory_space<vmem>>, vector<8x32xf32>
    %cst = arith.constant dense<0.000000e+00> : vector<128x32xf32>
    %2 = tpu.matmul %0, %1, %cst {dimension_numbers = #tpu.dot_dimension_numbers<[1], [0], [0], [1], [0, 0, 1, 1], [], []>} : vector<128x8xf32>, vector<8x32xf32>, vector<128x32xf32> -> vector<128x32xf32>
    %c0_3 = arith.constant 0 : index
    %c0_4 = arith.constant 0 : index
    %3 = vector.load %arg3[%c0_3, %c0_4] : memref<128x32xf32, #tpu.memory_space<vmem>>, vector<128x32xf32>
    tpu.vector_store %arg3[%c0_3, %c0_4], %2 {strides = array<i32>} : memref<128x32xf32, #tpu.memory_space<vmem>>, vector<128x32xf32>,
    return
  }
  func.func @transform_0(%arg0: i32) -> (i32, i32) {
    %c0_i32 = arith.constant 0 : i32
    %c0_i32_0 = arith.constant 0 : i32
    return %arg0, %c0_i32 : i32, i32
  }
  func.func @transform_1(%arg0: i32) -> (i32, i32) {
    %c0_i32 = arith.constant 0 : i32
    %c0_i32_0 = arith.constant 0 : i32
    %c0_i32_1 = arith.constant 0 : i32
    return %c0_i32, %c0_i32_0 : i32, i32
  }
  func.func @transform_2(%arg0: i32) -> (i32, i32) {
    %c0_i32 = arith.constant 0 : i32
    %c0_i32_0 = arith.constant 0 : i32
    return %arg0, %c0_i32 : i32, i32
  }
}

</mosaic_0001>

<llo_original>
// kernel: tpu_custom_call.1
$region0: #{tpu_custom_call.1}
  #allocation0 [shape = 'u32[]', space=smem, size = 0x4, offset = 0x4, fixed_abs, tag = 'smem constant byte address 0x4 - core index']
  #allocation1 [shape = 'u32[144,128]{1,0:T(1,128)}', space=vmem, size = 0x12000, scoped, tag = 'internal scratch']
  %s0 = inlined_call_operand.vmem [shape: f32[256,8], index: 0, kind: input, shape index: {}]
  %s1 = inlined_call_operand.vmem [shape: f32[8,32], index: 1, kind: input, shape index: {}]
  %s2 = inlined_call_operand.vmem [shape: f32[256,32], index: 2, kind: output, shape index: {}]
  %s3 = sld [smem:[#allocation0]]
  $region41: #{tpu_custom_call.1} parent=0
    _
  %s5 = ssub.s32 1, %s3
  %s6 = scalar_select 0, %s5, %s3
  loop: start=0, step=1, limit=4
  $region2: #{tpu_custom_call.1} parent=0 // loop_pre_header
    _
  $region3: #{tpu_custom_call.1} parent=0 // loop_header
    %s8 = sphi 0, %s12
    %p9 = scmp.ge.s32.totalorder %s8, 4
    %s18 = sphi 0, %s20
    %s21 = sphi 0, %s18
    %s22 = sphi 0, %s21
    %s38 = sphi 0, %s22
    %s42 = sphi 0, %s42
    %s44 = sphi 0, %s42
    %s45 = sphi 0, %s44
    %s59 = sphi 0, %s45
    %s65 = sphi 0, %s67
    %s68 = sphi 0, %s65
    %s69 = sphi 0, %s68
    %s85 = sphi 0, %s69
  $region4: #{tpu_custom_call.1} parent=0 // loop_header_branch
    %11 = sbr.rel (%p9) target = $region8
  $region5: #{tpu_custom_call.1} parent=0 // loop_body
    %s13 = ssub.s32 %s8, 1
    %s14 = ssub.s32 %s8, 2
    %s15 = sadd.s32 %s8, 1
    %s16 = ssub.s32 %s8, %s15
    %p17 = scmp.eq.s32.totalorder %s16, 0
    %s19 = sadd.s32 %s18, 1
    %s20 = scalar_select %p17, %s18, %s19
    %p23 = pneg %p17
    %p24 = scmp.eq.s32.totalorder %s8, 1
    %p25 = por %p23, %p24
    %p26 = scmp.ne.s32.totalorder %s18, %s21
    %p27 = scmp.eq.s32.totalorder %s8, 0
    %p28 = por %p26, %p27
    %p29 = scmp.ne.s32.totalorder %s18, %s21
    %p30 = scmp.eq.s32.totalorder %s13, 1
    %p31 = por %p29, %p30
    %p32 = scmp.ne.s32.totalorder %s21, %s22
    %p33 = scmp.eq.s32.totalorder %s13, 0
    %p34 = por %p32, %p33
    %p35 = scmp.ne.s32.totalorder %s21, %s22
    %p36 = scmp.eq.s32.totalorder %s14, 1
    %p37 = por %p35, %p36
    %p39 = scmp.ne.s32.totalorder %s22, %s38
    %p40 = scmp.eq.s32.totalorder %s14, 0
    %p41 = por %p39, %p40
    %s43 = sadd.s32 %s42, 1
    %p46 = scmp.eq.s32.totalorder %s8, 1
    %p47 = scmp.ne.s32.totalorder %s42, %s44
    %p48 = scmp.eq.s32.totalorder %s8, 0
    %p49 = por %p47, %p48
    %p50 = scmp.ne.s32.totalorder %s42, %s44
    %p51 = scmp.eq.s32.totalorder %s13, 1
    %p52 = por %p50, %p51
    %p53 = scmp.ne.s32.totalorder %s44, %s45
    %p54 = scmp.eq.s32.totalorder %s13, 0
    %p55 = por %p53, %p54
    %p56 = scmp.ne.s32.totalorder %s44, %s45
    %p57 = scmp.eq.s32.totalorder %s14, 1
    %p58 = por %p56, %p57
    %p60 = scmp.ne.s32.totalorder %s45, %s59
    %p61 = scmp.eq.s32.totalorder %s14, 0
    %p62 = por %p60, %p61
    %s63 = ssub.s32 %s8, %s15
    %p64 = scmp.eq.s32.totalorder %s63, 0
    %s66 = sadd.s32 %s65, 1
    %s67 = scalar_select %p64, %s65, %s66
    %p70 = pneg %p64
    %p71 = scmp.eq.s32.totalorder %s8, 1
    %p72 = por %p70, %p71
    %p73 = scmp.ne.s32.totalorder %s65, %s68
    %p74 = scmp.eq.s32.totalorder %s8, 0
    %p75 = por %p73, %p74
    %p76 = scmp.ne.s32.totalorder %s65, %s68
    %p77 = scmp.eq.s32.totalorder %s13, 1
    %p78 = por %p76, %p77
    %p79 = scmp.ne.s32.totalorder %s68, %s69
    %p80 = scmp.eq.s32.totalorder %s13, 0
    %p81 = por %p79, %p80
    %p82 = scmp.ne.s32.totalorder %s68, %s69
    %p83 = scmp.eq.s32.totalorder %s14, 1
    %p84 = por %p82, %p83
    %p86 = scmp.ne.s32.totalorder %s69, %s85
    %p87 = scmp.eq.s32.totalorder %s14, 0
    %p88 = por %p86, %p87
    %p89 = scmp.le.s32.totalorder 1, %s8
    %p90 = scmp.lt.s32.totalorder %s8, 3
    %p91 = pnand %p89, %p90
    %p92 = pneg %p91
    // Predicated region
    $region9: #{tpu_custom_call.1} parent=5 // pred_check
      _
    $region10: #{tpu_custom_call.1} parent=5 // pred_check_branch
      %94 = sbr.rel (%p91) target = $region12
    $region11: #{tpu_custom_call.1} parent=5 // pred_region
      %s95 = ssub.s32 %s8, 1
      // Predicated region
      $region13: #{tpu_custom_call.1} parent=11 // pred_check
        %p96 = pneg %p55
      $region14: #{tpu_custom_call.1} parent=11 // pred_check_branch
        %98 = sbr.rel (%p96) target = $region16
      $region15: #{tpu_custom_call.1} parent=11 // pred_region
        _
      $region16: #{tpu_custom_call.1} parent=11 // pred_fallthru
        _
    $region12: #{tpu_custom_call.1} parent=5 // pred_fallthru
      _
    %p99 = scmp.lt.s32.totalorder %s8, 2
    // Predicated region
    $region17: #{tpu_custom_call.1} parent=5 // pred_check
      %p100 = pneg %p99
    $region18: #{tpu_custom_call.1} parent=5 // pred_check_branch
      %102 = sbr.rel (%p100) target = $region20
    $region19: #{tpu_custom_call.1} parent=5 // pred_region
      // Predicated region
      $region21: #{tpu_custom_call.1} parent=19 // pred_check
        %p103 = pneg %p28
      $region22: #{tpu_custom_call.1} parent=19 // pred_check_branch
        %105 = sbr.rel (%p103) target = $region24
      $region23: #{tpu_custom_call.1} parent=19 // pred_region
        %s106 = smul.u32 16, %s8
        %p107 = scmp.lt.s32.totalorder %s106, 31
        %s108 = scalar_select %p107, %s106, 31
        %s109 = smul.addr %s108, 8
        %s110 = scalar_lea.vmem %s0, %s109
        %s111 = smul.u32 16, %s8
      $region24: #{tpu_custom_call.1} parent=19 // pred_fallthru
        _
    $region20: #{tpu_custom_call.1} parent=5 // pred_fallthru
      _
    %p112 = scmp.le.s32.totalorder 1, %s8
    %p113 = scmp.lt.s32.totalorder %s8, 3
    %p114 = pnand %p112, %p113
    %p115 = pneg %p114
    // Predicated region
    $region25: #{tpu_custom_call.1} parent=5 // pred_check
      _
    $region26: #{tpu_custom_call.1} parent=5 // pred_check_branch
      %117 = sbr.rel (%p114) target = $region28
    $region27: #{tpu_custom_call.1} parent=5 // pred_region
      %s118 = ssub.s32 %s8, 1
      %s119 = smul.u32 16, %s13
      %p120 = scmp.lt.s32.totalorder %s119, 31
      %s121 = scalar_select %p120, %s119, 31
      %s122 = smul.addr %s121, 8
      %s123 = scalar_lea.vmem %s0, %s122
      %p124 = pneg %p34
      %p125 = pneg %p31
      %p126 = pneg %p55
      %p127 = pneg %p52
      %p128 = pneg %p81
      %p129 = pneg %p78
      %s130 = smul.u32 16, %s13
      %p131 = scmp.lt.s32.totalorder %s130, 31
      %s132 = scalar_select %p131, %s130, 31
      %s133 = smul.addr %s132, 8
      %s134 = scalar_lea.vmem %s2, %s133
      %s135 = smul.u32 16, %s13
      %p136 = scmp.lt.s32.totalorder %s135, 31
      %s137 = scalar_select %p136, %s135, 31
      %s138 = smul.addr %s137, 8
      %s139 = scalar_lea.vmem %s0, %s138
      %s140 = smul.u32 16, %s13
      %s141 = smul.u32 16, %s13
      %p142 = scmp.lt.s32.totalorder %s141, 31
      %s143 = scalar_select %p142, %s141, 31
      %s144 = smul.addr %s143, 8
      %s145 = scalar_lea.vmem %s2, %s144
      %s146 = smul.u32 16, %s13
      %v147 = vld [vmem:[%s139] sm:$0xff]
      %v148 = vld [vmem:[%s139 + $0x8] sm:$0xff]
      %v149 = vld [vmem:[%s139 + $0x10] sm:$0xff]
      %v150 = vld [vmem:[%s139 + $0x18] sm:$0xff]
      %v151 = vld [vmem:[%s139 + $0x20] sm:$0xff]
      %v152 = vld [vmem:[%s139 + $0x28] sm:$0xff]
      %v153 = vld [vmem:[%s139 + $0x30] sm:$0xff]
      %v154 = vld [vmem:[%s139 + $0x38] sm:$0xff]
      %v155 = vld [vmem:[%s139 + $0x40] sm:$0xff]
      %v156 = vld [vmem:[%s139 + $0x48] sm:$0xff]
      %v157 = vld [vmem:[%s139 + $0x50] sm:$0xff]
      %v158 = vld [vmem:[%s139 + $0x58] sm:$0xff]
      %v159 = vld [vmem:[%s139 + $0x60] sm:$0xff]
      %v160 = vld [vmem:[%s139 + $0x68] sm:$0xff]
      %v161 = vld [vmem:[%s139 + $0x70] sm:$0xff]
      %v162 = vld [vmem:[%s139 + $0x78] sm:$0xff]
      %v163 = vld [vmem:[%s1] sm:$0xff]
      %vm164 = vcmask 64512
      %v166 = vsel %vm164, %v147, 0
      %v169 = vsel %vm164, %v148, 0
      %v172 = vsel %vm164, %v149, 0
      %v175 = vsel %vm164, %v150, 0
      %v178 = vsel %vm164, %v151, 0
      %v181 = vsel %vm164, %v152, 0
      %v184 = vsel %vm164, %v153, 0
      %v187 = vsel %vm164, %v154, 0
      %v190 = vsel %vm164, %v155, 0
      %v193 = vsel %vm164, %v156, 0
      %v196 = vsel %vm164, %v157, 0
      %v199 = vsel %vm164, %v158, 0
      %v202 = vsel %vm164, %v159, 0
      %v205 = vsel %vm164, %v160, 0
      %v208 = vsel %vm164, %v161, 0
      %v211 = vsel %vm164, %v162, 0
      %213 = vmatprep.subr.mxu0 0.0
      %214 = vmatpush1.msra.mxu0 %v163
      %215 = vmatprep.subr.mxu0 0.0
      %216 = vmatpush1.msra.mxu0 0.0
      %217 = vmatprep.subr.mxu0 0.0
      %218 = vmatpush1.msra.mxu0 0.0
      %219 = vmatprep.subr.mxu0 0.0
      %220 = vmatpush1.msra.mxu0 0.0
      %221 = vmatprep.subr.mxu0 0.0
      %222 = vmatpush1.msra.mxu0 0.0
      %223 = vmatprep.subr.mxu0 0.0
      %224 = vmatpush1.msra.mxu0 0.0
      %225 = vmatprep.subr.mxu0 0.0
      %226 = vmatpush1.msra.mxu0 0.0
      %227 = vmatprep.subr.mxu0 0.0
      %228 = vmatpush1.msra.mxu0 0.0
      %229 = vmatprep.subr.mxu0 0.0
      %230 = vmatpush1.msra.mxu0 0.0
      %231 = vmatprep.subr.mxu0 0.0
      %232 = vmatpush1.msra.mxu0 0.0
      %233 = vmatprep.subr.mxu0 0.0
      %234 = vmatpush1.msra.mxu0 0.0
      %235 = vmatprep.subr.mxu0 0.0
      %236 = vmatpush1.msra.mxu0 0.0
      %237 = vmatprep.subr.mxu0 0.0
      %238 = vmatpush1.msra.mxu0 0.0
      %239 = vmatprep.subr.mxu0 0.0
      %240 = vmatpush1.msra.mxu0 0.0
      %241 = vmatprep.subr.mxu0 0.0
      %242 = vmatpush1.msra.mxu0 0.0
      %243 = vmatprep.subr.mxu0 0.0
      %244 = vmatpush1.msra.mxu0 0.0
      %245 = vmatprep.subr.mxu0 0.0
      %246 = vmatpush1.msra.mxu0 0.0
      %247 = vmatprep.subr.mxu0 0.0
      %248 = vmatpush1.msra.mxu0 0.0
      %249 = vmatprep.subr.mxu0 0.0
      %250 = vmatpush1.msra.mxu0 0.0
      %251 = vmatprep.subr.mxu0 0.0
      %252 = vmatpush1.msra.mxu0 0.0
      %253 = vmatprep.subr.mxu0 0.0
      %254 = vmatpush1.msra.mxu0 0.0
      %255 = vmatprep.subr.mxu0 0.0
      %256 = vmatpush1.msra.mxu0 0.0
      %257 = vmatprep.subr.mxu0 0.0
      %258 = vmatpush1.msra.mxu0 0.0
      %259 = vmatprep.subr.mxu0 0.0
      %260 = vmatpush1.msra.mxu0 0.0
      %261 = vmatprep.subr.mxu0 0.0
      %262 = vmatpush1.msra.mxu0 0.0
      %263 = vmatprep.subr.mxu0 0.0
      %264 = vmatpush1.msra.mxu0 0.0
      %265 = vmatprep.subr.mxu0 0.0
      %266 = vmatpush1.msra.mxu0 0.0
      %267 = vmatprep.subr.mxu0 0.0
      %268 = vmatpush1.msra.mxu0 0.0
      %269 = vmatprep.subr.mxu0 0.0
      %270 = vmatpush1.msra.mxu0 0.0
      %271 = vmatprep.subr.mxu0 0.0
      %272 = vmatpush1.msra.mxu0 0.0
      %273 = vmatprep.subr.mxu0 0.0
      %274 = vmatpush1.msra.mxu0 0.0
      %275 = vmatprep.subr.mxu0 0.0
      %276 = vmatpush1.msra.mxu0 0.0
      %277 = vmatprep.mubr.f32.mxu0 0.0
      %278 = vmatmul.mubr.f32.gmra.mrb[0].mxu0 %v166
      %v279 = vpop.f32.mrb[0].mxu0
      %v280 = vadd.f32 0.0, %v279
      %v281 = vpop.f32.mrb[0].mxu0
      %282 = vmatprep.mubr.f32.mxu0 0.0
      %283 = vmatmul.mubr.f32.gmra.mrb[0].mxu0 %v169
      %v284 = vpop.f32.mrb[0].mxu0
      %v285 = vadd.f32 0.0, %v284
      %v286 = vpop.f32.mrb[0].mxu0
      %287 = vmatprep.mubr.f32.mxu0 0.0
      %288 = vmatmul.mubr.f32.gmra.mrb[0].mxu0 %v172
      %v289 = vpop.f32.mrb[0].mxu0
      %v290 = vadd.f32 0.0, %v289
      %v291 = vpop.f32.mrb[0].mxu0
      %292 = vmatprep.mubr.f32.mxu0 0.0
      %293 = vmatmul.mubr.f32.gmra.mrb[0].mxu0 %v175
      %v294 = vpop.f32.mrb[0].mxu0
      %v295 = vadd.f32 0.0, %v294
      %v296 = vpop.f32.mrb[0].mxu0
      %297 = vmatprep.mubr.f32.mxu0 0.0
      %298 = vmatmul.mubr.f32.gmra.mrb[0].mxu0 %v178
      %v299 = vpop.f32.mrb[0].mxu0
      %v300 = vadd.f32 0.0, %v299
      %v301 = vpop.f32.mrb[0].mxu0
      %302 = vmatprep.mubr.f32.mxu0 0.0
      %303 = vmatmul.mubr.f32.gmra.mrb[0].mxu0 %v181
      %v304 = vpop.f32.mrb[0].mxu0
      %v305 = vadd.f32 0.0, %v304
      %v306 = vpop.f32.mrb[0].mxu0
      %307 = vmatprep.mubr.f32.mxu0 0.0
      %308 = vmatmul.mubr.f32.gmra.mrb[0].mxu0 %v184
      %v309 = vpop.f32.mrb[0].mxu0
      %v310 = vadd.f32 0.0, %v309
      %v311 = vpop.f32.mrb[0].mxu0
      %312 = vmatprep.mubr.f32.mxu0 0.0
      %313 = vmatmul.mubr.f32.gmra.mrb[0].mxu0 %v187
      %v314 = vpop.f32.mrb[0].mxu0
      %v315 = vadd.f32 0.0, %v314
      %v316 = vpop.f32.mrb[0].mxu0
      %317 = vmatprep.mubr.f32.mxu0 0.0
      %318 = vmatmul.mubr.f32.gmra.mrb[0].mxu0 %v190
      %v319 = vpop.f32.mrb[0].mxu0
      %v320 = vadd.f32 0.0, %v319
      %v321 = vpop.f32.mrb[0].mxu0
      %322 = vmatprep.mubr.f32.mxu0 0.0
      %323 = vmatmul.mubr.f32.gmra.mrb[0].mxu0 %v193
      %v324 = vpop.f32.mrb[0].mxu0
      %v325 = vadd.f32 0.0, %v324
      %v326 = vpop.f32.mrb[0].mxu0
      %327 = vmatprep.mubr.f32.mxu0 0.0
      %328 = vmatmul.mubr.f32.gmra.mrb[0].mxu0 %v196
      %v329 = vpop.f32.mrb[0].mxu0
      %v330 = vadd.f32 0.0, %v329
      %v331 = vpop.f32.mrb[0].mxu0
      %332 = vmatprep.mubr.f32.mxu0 0.0
      %333 = vmatmul.mubr.f32.gmra.mrb[0].mxu0 %v199
      %v334 = vpop.f32.mrb[0].mxu0
      %v335 = vadd.f32 0.0, %v334
      %v336 = vpop.f32.mrb[0].mxu0
      %337 = vmatprep.mubr.f32.mxu0 0.0
      %338 = vmatmul.mubr.f32.gmra.mrb[0].mxu0 %v202
      %v339 = vpop.f32.mrb[0].mxu0
      %v340 = vadd.f32 0.0, %v339
      %v341 = vpop.f32.mrb[0].mxu0
      %342 = vmatprep.mubr.f32.mxu0 0.0
      %343 = vmatmul.mubr.f32.gmra.mrb[0].mxu0 %v205
      %v344 = vpop.f32.mrb[0].mxu0
      %v345 = vadd.f32 0.0, %v344
      %v346 = vpop.f32.mrb[0].mxu0
      %347 = vmatprep.mubr.f32.mxu0 0.0
      %348 = vmatmul.mubr.f32.gmra.mrb[0].mxu0 %v208
      %v349 = vpop.f32.mrb[0].mxu0
      %v350 = vadd.f32 0.0, %v349
      %v351 = vpop.f32.mrb[0].mxu0
      %352 = vmatprep.mubr.f32.mxu0 0.0
      %353 = vmatmul.mubr.f32.gmra.mrb[0].mxu0 %v211
      %v354 = vpop.f32.mrb[0].mxu0
      %v355 = vadd.f32 0.0, %v354
      %v356 = vpop.f32.mrb[0].mxu0
      %357 = vdwg.mxu0
      %vm358 = vcmask 261120
      %359 = vst.msk [vmem:[%s145] sm:$0xff] %vm358, %v280
      %360 = vst.msk [vmem:[%s145 + $0x8] sm:$0xff] %vm358, %v285
      %361 = vst.msk [vmem:[%s145 + $0x10] sm:$0xff] %vm358, %v290
      %362 = vst.msk [vmem:[%s145 + $0x18] sm:$0xff] %vm358, %v295
      %363 = vst.msk [vmem:[%s145 + $0x20] sm:$0xff] %vm358, %v300
      %364 = vst.msk [vmem:[%s145 + $0x28] sm:$0xff] %vm358, %v305
      %365 = vst.msk [vmem:[%s145 + $0x30] sm:$0xff] %vm358, %v310
      %366 = vst.msk [vmem:[%s145 + $0x38] sm:$0xff] %vm358, %v315
      %367 = vst.msk [vmem:[%s145 + $0x40] sm:$0xff] %vm358, %v320
      %368 = vst.msk [vmem:[%s145 + $0x48] sm:$0xff] %vm358, %v325
      %369 = vst.msk [vmem:[%s145 + $0x50] sm:$0xff] %vm358, %v330
      %370 = vst.msk [vmem:[%s145 + $0x58] sm:$0xff] %vm358, %v335
      %371 = vst.msk [vmem:[%s145 + $0x60] sm:$0xff] %vm358, %v340
      %372 = vst.msk [vmem:[%s145 + $0x68] sm:$0xff] %vm358, %v345
      %373 = vst.msk [vmem:[%s145 + $0x70] sm:$0xff] %vm358, %v350
      %374 = vst.msk [vmem:[%s145 + $0x78] sm:$0xff] %vm358, %v355
      %s375 = smul.u32 16, %s13
      %p376 = scmp.lt.s32.totalorder %s375, 31
      %s377 = scalar_select %p376, %s375, 31
      %s378 = smul.addr %s377, 8
      %s379 = scalar_lea.vmem %s2, %s378
      // Predicated region
      $region29: #{tpu_custom_call.1} parent=27 // pred_check
        %p380 = pneg %p78
      $region30: #{tpu_custom_call.1} parent=27 // pred_check_branch
        %382 = sbr.rel (%p380) target = $region32
      $region31: #{tpu_custom_call.1} parent=27 // pred_region
        %s383 = smul.u32 16, %s13
      $region32: #{tpu_custom_call.1} parent=27 // pred_fallthru
        _
    $region28: #{tpu_custom_call.1} parent=5 // pred_fallthru
      _
    %p384 = scmp.le.s32.totalorder 2, %s8
    // Predicated region
    $region33: #{tpu_custom_call.1} parent=5 // pred_check
      %p385 = pneg %p384
    $region34: #{tpu_custom_call.1} parent=5 // pred_check_branch
      %387 = sbr.rel (%p385) target = $region36
    $region35: #{tpu_custom_call.1} parent=5 // pred_region
      %s388 = ssub.s32 %s8, 2
      // Predicated region
      $region37: #{tpu_custom_call.1} parent=35 // pred_check
        %p389 = pneg %p84
      $region38: #{tpu_custom_call.1} parent=35 // pred_check_branch
        %391 = sbr.rel (%p389) target = $region40
      $region39: #{tpu_custom_call.1} parent=35 // pred_region
        %s392 = smul.u32 16, %s14
        %p393 = scmp.lt.s32.totalorder %s392, 31
        %s394 = scalar_select %p393, %s392, 31
        %s395 = smul.addr %s394, 8
        %s396 = scalar_lea.vmem %s2, %s395
      $region40: #{tpu_custom_call.1} parent=35 // pred_fallthru
        _
    $region36: #{tpu_custom_call.1} parent=5 // pred_fallthru
      _
  $region6: #{tpu_custom_call.1} parent=0 // loop_footer
    %s12 = sadd.s32 1, %s8
  $region7: #{tpu_custom_call.1} parent=0 // loop_footer_branch
    %7 = sbr.rel target = $region3
  $region8: #{tpu_custom_call.1} parent=0 // loop_exit
    _

</llo_original>
